<compile_context>
chip_gen: v6e
topology: v6e:2x2x1
jax: 0.10.0
libtpu: 0.0.40
codegen_flags: <defaults>
</compile_context>

<pallas_src>
import jax
import jax.numpy as jnp
from jax.experimental import pallas as pl
from jax.experimental.pallas import tpu as pltpu

LANE = 128


def _round_up(v: int, m: int) -> int:
    return -(-v // m) * m


def _cdiv(a: int, b: int) -> int:
    return -(-a // b)


def _make_kernel(M: int, TILE_M: int, ROW_BLOCK: int, n_groups: int, n_safe: int):
    """Build the per-block kernel.

    Each grid step (i, k) reads an (ROW_BLOCK, TILE_M) tile of x and writes a
    lane-dense (ROW_BLOCK, 128) tile of per-row partial sums of
    sqrt(eps^2 + x^2) (NaNs -> 0) plus a matching tile of per-row non-NaN
    counts (f32).
    """
    masked_tail = n_safe < n_groups

    def kernel(eps_ref, x_ref, sum_ref, cnt_ref):
        eps = eps_ref[0]
        eps2 = eps * eps

        if masked_tail:
            # absolute column index of each lane within a 128-wide group
            lane = jax.lax.broadcasted_iota(jnp.int32, (ROW_BLOCK, LANE), 1)
            col0 = pl.program_id(1) * TILE_M

        def add_group(g, v_acc, c_acc, masked):
            xg = x_ref[:, g * LANE:(g + 1) * LANE].astype(jnp.float32)
            valid = xg == xg                       # False exactly where x is NaN
            if masked:                             # ragged column edge
                valid = jnp.logical_and(valid, lane + (col0 + g * LANE) < M)
            v_acc = v_acc + jnp.where(valid, jnp.sqrt(eps2 + xg * xg), 0.0)
            c_acc = c_acc + valid.astype(jnp.float32)
            return v_acc, c_acc

        v_acc = jnp.zeros((ROW_BLOCK, LANE), jnp.float32)
        c_acc = jnp.zeros((ROW_BLOCK, LANE), jnp.float32)
        # lane groups that can never read past column M (for any k): unmasked
        for g in range(n_safe):
            v_acc, c_acc = add_group(g, v_acc, c_acc, masked=False)
        # lane groups that may read out-of-bounds columns on the last k block
        for g in range(n_safe, n_groups):
            v_acc, c_acc = add_group(g, v_acc, c_acc, masked=True)

        sum_ref[...] = v_acc
        cnt_ref[...] = c_acc

    return kernel


def weighted_l1_norm(x, w, eps):
    """x: (N, C, H, W) float, w: (C,) float, eps: python / 0-d float scalar."""
    N, C, H, W = x.shape
    R, M = N * C, H * W

    # NCHW is contiguous as (N*C, H*W): free view, no HBM transpose / pad copy.
    x2d = x.reshape(R, M)

    # ---- tile selection ----------------------------------------------------
    SUB = 8 * max(1, 4 // x.dtype.itemsize)     # packed sublane multiple
    TILE_M_MAX = 8192                           # <= 64 lane groups, fully unrolled
    ROW_BLOCK_MAX = 256
    BLOCK_ELEMS = 2 * 1024 * 1024               # ~8 MiB of f32 compute per block

    TILE_M = min(_round_up(M, LANE), TILE_M_MAX)
    n_k = _cdiv(M, TILE_M)
    rows_cap = max(SUB, (BLOCK_ELEMS // TILE_M) // SUB * SUB)
    ROW_BLOCK = min(ROW_BLOCK_MAX, rows_cap, _round_up(R, SUB))
    n_i = _cdiv(R, ROW_BLOCK)

    # guarantee >= 2 grid cells so megacore (v7x) can shard the parallel axes
    if n_i == 1 and n_k == 1:
        if R >= 2 * SUB:
            n_i = 2
        elif M >= 2 * LANE:
            n_k = 2

    # rebalance block sizes: even work per block + minimal masked column tail
    ROW_BLOCK = _round_up(_cdiv(R, n_i), SUB)
    TILE_M = _round_up(_cdiv(M, n_k), LANE)
    n_i = _cdiv(R, ROW_BLOCK)
    n_k = _cdiv(M, TILE_M)

    n_groups = TILE_M // LANE
    n_safe = min(n_groups, (M - (n_k - 1) * TILE_M) // LANE)

    grid = (n_i, n_k)
    out_rows = n_i * ROW_BLOCK
    out_cols = n_k * LANE
    eps_arr = jnp.reshape(jnp.asarray(eps, jnp.float32), (1,))

    cost = pl.CostEstimate(
        flops=6 * R * M,
        transcendentals=R * M,
        bytes_accessed=R * M * x.dtype.itemsize + 2 * out_rows * out_cols * 4,
    )

    kernel = _make_kernel(M, TILE_M, ROW_BLOCK, n_groups, n_safe)

    sums, cnts = pl.pallas_call(
        kernel,
        out_shape=(
            jax.ShapeDtypeStruct((out_rows, out_cols), jnp.float32),
            jax.ShapeDtypeStruct((out_rows, out_cols), jnp.float32),
        ),
        grid_spec=pltpu.PrefetchScalarGridSpec(
            num_scalar_prefetch=1,                      # eps -> SMEM
            grid=grid,
            in_specs=[
                pl.BlockSpec((ROW_BLOCK, TILE_M), lambda i, k, eps_s: (i, k)),
            ],
            out_specs=(
                pl.BlockSpec((ROW_BLOCK, LANE), lambda i, k, eps_s: (i, k)),
                pl.BlockSpec((ROW_BLOCK, LANE), lambda i, k, eps_s: (i, k)),
            ),
        ),
        compiler_params=pltpu.CompilerParams(
            dimension_semantics=("parallel", "parallel"),
            vmem_limit_bytes=40 * 1024 * 1024,
        ),
        cost_estimate=cost,
    )(eps_arr, x2d)

    # ---- tiny finalization (O(N*C*n_k) work, plain XLA) --------------------
    # rows >= R are out-of-bounds sublanes of the last row block (garbage) and
    # are simply dropped here: no in-kernel row masking needed.
    row_sum = jnp.sum(sums[:R], axis=1)                       # (R,)
    per_channel = jnp.sum(row_sum.reshape(N, C), axis=0)      # (C,)
    # counts are exact: each f32 partial counts <= ceil(M/128) < 2^24 elements.
    total_valid = jnp.sum(cnts[:R])                           # scalar, f32
    weighted = jnp.nansum(per_channel * w.astype(jnp.float32))
    return weighted / (total_valid / C)


def _reference(x, w, eps):
    # pure-JAX reference mirroring the torch semantics
    val = jnp.sqrt(eps ** 2 + x ** 2)
    loss = jnp.nansum(val, axis=3)
    loss = jnp.nansum(loss, axis=2)
    loss = jnp.nansum(loss, axis=0)
    loss = jnp.nansum(loss * w)
    denom = jnp.sum(jnp.logical_not(jnp.isnan(x)).astype(jnp.float32)) / x.shape[1]
    return loss / denom


if __name__ == "__main__":
    key = jax.random.PRNGKey(0)
    k1, k2, k3, k4 = jax.random.split(key, 4)

    eps = 0.1

    # case 1: lane-aligned spatial dims (exercises the multi-k parallel grid)
    x1 = jax.random.normal(k1, (2, 4, 16, 16), dtype=jnp.float32)
    x1 = x1.at[0, 0, 0, 0].set(jnp.nan)
    x1 = x1.at[1, 2, 5, 7].set(jnp.nan)
    w1 = jax.random.uniform(k2, (4,), dtype=jnp.float32)

    # case 2: ragged spatial / channel dims (exercises the in-kernel masked
    # column tail and out-of-bounds row dropping -- no HBM pad copy anywhere)
    x2 = jax.random.normal(k3, (2, 3, 13, 11), dtype=jnp.float32)
    x2 = x2.at[1, 1, 4, 3].set(jnp.nan)
    w2 = jax.random.uniform(k4, (3,), dtype=jnp.float32)

    for x, w in ((x1, w1), (x2, w2)):
        out = jax.block_until_ready(weighted_l1_norm(x, w, eps))
        ref = jax.block_until_ready(_reference(x, w, eps))
        assert jnp.allclose(out, ref, rtol=1e-5, atol=1e-5), (out, ref)

    print("KERNEL_OK")
</pallas_src>

<mosaic_0001>
module attributes {stable_mosaic.version = 11 : i64} {
  func.func @kernel(%arg0: i32, %arg1: i32, %arg2: memref<1xf32, #tpu.memory_space<smem>>, %arg3: memref<8x128xf32, #tpu.memory_space<vmem>>, %arg4: memref<8x128xf32, #tpu.memory_space<vmem>>, %arg5: memref<8x128xf32, #tpu.memory_space<vmem>>) attributes {dimension_semantics = [#tpu.dimension_semantics<parallel>, #tpu.dimension_semantics<parallel>], iteration_bounds = array<i64: 1, 2>, scalar_prefetch = 1 : i64, scratch_operands = 0 : i64, tpu.core_type = #tpu.core_type<tc>, window_params = [{transform_indices = @transform_0, window_bounds = array<i64: 8, 128>}, {transform_indices = @transform_1, window_bounds = array<i64: 8, 128>}, {transform_indices = @transform_2, window_bounds = array<i64: 8, 128>}]} {
    %c0 = arith.constant 0 : index
    %0 = memref.load %arg2[%c0] : memref<1xf32, #tpu.memory_space<smem>>
    %1 = arith.mulf %0, %0 : f32
    %cst = arith.constant 0.000000e+00 : f32
    %2 = vector.broadcast %cst : f32 to vector<8x128xf32>
    %cst_0 = arith.constant 0.000000e+00 : f32
    %3 = vector.broadcast %cst_0 : f32 to vector<8x128xf32>
    %c0_1 = arith.constant 0 : index
    %c0_2 = arith.constant 0 : index
    %4 = vector.load %arg3[%c0_1, %c0_2] : memref<8x128xf32, #tpu.memory_space<vmem>>, vector<8x128xf32>
    %5 = arith.cmpf oeq, %4, %4 : vector<8x128xf32>
    %6 = arith.mulf %4, %4 : vector<8x128xf32>
    %7 = vector.broadcast %1 : f32 to vector<8x128xf32>
    %8 = arith.addf %7, %6 : vector<8x128xf32>
    %9 = math.sqrt %8 : vector<8x128xf32>
    %cst_3 = arith.constant 0.000000e+00 : f32
    %10 = vector.broadcast %cst_3 : f32 to vector<8x128xf32>
    %11 = arith.select %5, %9, %10 : vector<8x128xi1>, vector<8x128xf32>
    %12 = arith.addf %2, %11 : vector<8x128xf32>
    %13 = arith.extui %5 : vector<8x128xi1> to vector<8x128xi32>
    %14 = arith.sitofp %13 : vector<8x128xi32> to vector<8x128xf32>
    %15 = arith.addf %3, %14 : vector<8x128xf32>
    %c0_4 = arith.constant 0 : index
    %c0_5 = arith.constant 0 : index
    %16 = vector.load %arg4[%c0_4, %c0_5] : memref<8x128xf32, #tpu.memory_space<vmem>>, vector<8x128xf32>
    tpu.vector_store %arg4[%c0_4, %c0_5], %12 {strides = array<i32>} : memref<8x128xf32, #tpu.memory_space<vmem>>, vector<8x128xf32>,
    %c0_6 = arith.constant 0 : index
    %c0_7 = arith.constant 0 : index
    %17 = vector.load %arg5[%c0_6, %c0_7] : memref<8x128xf32, #tpu.memory_space<vmem>>, vector<8x128xf32>
    tpu.vector_store %arg5[%c0_6, %c0_7], %15 {strides = array<i32>} : memref<8x128xf32, #tpu.memory_space<vmem>>, vector<8x128xf32>,
    return
  }
  func.func @transform_0(%arg0: i32, %arg1: i32, %arg2: memref<1xf32, #tpu.memory_space<smem>>) -> (i32, i32) {
    %c0_i32 = arith.constant 0 : i32
    return %arg0, %arg1 : i32, i32
  }
  func.func @transform_1(%arg0: i32, %arg1: i32, %arg2: memref<1xf32, #tpu.memory_space<smem>>) -> (i32, i32) {
    %c0_i32 = arith.constant 0 : i32
    return %arg0, %arg1 : i32, i32
  }
  func.func @transform_2(%arg0: i32, %arg1: i32, %arg2: memref<1xf32, #tpu.memory_space<smem>>) -> (i32, i32) {
    %c0_i32 = arith.constant 0 : i32
    return %arg0, %arg1 : i32, i32
  }
}

</mosaic_0001>

<llo_original>
// kernel: tpu_custom_call.1
$region0: #{tpu_custom_call.1}
  #allocation0 [shape = 'u32[]', space=smem, size = 0x4, offset = 0x4, fixed_abs, tag = 'smem constant byte address 0x4 - core index']
  #allocation1 [shape = 'u32[144,128]{1,0:T(1,128)}', space=vmem, size = 0x12000, scoped, tag = 'internal scratch']
  #allocation2 [shape = 's32[1]{0}', space=sflag, size = 0x4, scoped, tag = 'scoped memory for tpu_custom_call.1']
  #allocation3 [shape = 'f32[1]{0:T(128)S(6)}', space=smem, size = 0x200, scoped, tag = 'prefetched SMEM operand 0']
  %s0 = inlined_call_operand.<no memory space> [shape: f32[1], index: 0, kind: input, shape index: {}]
  %s1 = inlined_call_operand.hbm [shape: f32[8,256], index: 1, kind: input, shape index: {}]
  %s2 = inlined_call_operand.hbm [shape: f32[8,256], index: 2, kind: output, shape index: {0}]
  %s3 = inlined_call_operand.hbm [shape: f32[8,256], index: 3, kind: output, shape index: {1}]
  %4 = xla_tuple %s2, %s3
  %s5 = sld [smem:[#allocation0]]
  $region49: #{tpu_custom_call.1} parent=0
    _
  %s7 = ssub.s32 1, %s5
  %s8 = scalar_select 0, %s7, %s5
  %9 = sst [smem:[#allocation3]] %s0
  $region1: #{tpu_custom_call.1} parent=0
    #allocation4 [shape = 'u8[8192]{0}', space=vmem, size = 0x2000, scoped, tag = 'input window, operand 1']
    #allocation5 [shape = 's32[2]{0}', space=sflag, size = 0x8, scoped, tag = 'scoped memory for tpu_custom_call.1']
    #allocation6 [shape = 's32[2]{0}', space=sflag, size = 0x8, scoped, tag = 'scoped memory for tpu_custom_call.1']
    #allocation7 [shape = 'u8[8192]{0}', space=vmem, size = 0x2000, scoped, tag = 'output window, operand 0']
    #allocation8 [shape = 'u8[8192]{0}', space=vmem, size = 0x2000, scoped, tag = 'output window, operand 1']
    #allocation9 [shape = 's32[2]{0}', space=sflag, size = 0x8, scoped, tag = 'scoped memory for tpu_custom_call.1']
    %10 = vsyncpa [#allocation5], 0
    %s11 = scalar_lea.sflag [#allocation5], 1
    %12 = vsyncpa %s11, 0
    %13 = vsyncpa [#allocation6], 0
    %s14 = scalar_lea.sflag [#allocation6], 1
    %15 = vsyncpa %s14, 0
    %16 = vsyncpa [#allocation9], 0
    %s17 = scalar_lea.sflag [#allocation9], 1
    %18 = vsyncpa %s17, 0
    loop: start=0, step=1, limit=4
    $region2: #{tpu_custom_call.1} parent=1 // loop_pre_header
      _
    $region3: #{tpu_custom_call.1} parent=1 // loop_header
      %s20 = sphi 0, %s24
      %p21 = scmp.ge.s32.totalorder %s20, 4
      %s27 = sphi 0, %s39
      %s28 = sphi 0, %s35
      %s29 = sphi 0, %s27
      %s30 = sphi 0, %s28
      %s31 = sphi 0, %s29
      %s32 = sphi 0, %s30
      %s44 = sphi 0, %s46
      %s47 = sphi 0, %s44
      %s48 = sphi 0, %s47
      %s64 = sphi 0, %s48
      %s72 = sphi 0, %s74
      %s75 = sphi 0, %s72
      %s76 = sphi 0, %s75
      %s92 = sphi 0, %s76
      %s100 = sphi 0, %s102
      %s103 = sphi 0, %s100
      %s104 = sphi 0, %s103
      %s120 = sphi 0, %s104
    $region4: #{tpu_custom_call.1} parent=1 // loop_header_branch
      %23 = sbr.rel (%p21) target = $region8
    $region5: #{tpu_custom_call.1} parent=1 // loop_body
      %s25 = ssub.s32 %s20, 1
      %s26 = ssub.s32 %s20, 2
      %s33 = sadd.s32 1, %s28
      %p34 = scmp.ge.s32.totalorder %s33, 2
      %s35 = scalar_select %p34, 0, %s33
      %s36 = sadd.s32 1, %s27
      %s37 = scalar_select %p34, %s36, %s27
      %p38 = scmp.ge.s32.totalorder %s37, 1
      %s39 = scalar_select %p38, 0, %s37
      %s40 = ssub.s32 %s27, %s39
      %s41 = ssub.s32 %s28, %s35
      %s42 = sor.u32 %s40, %s41
      %p43 = scmp.eq.s32.totalorder %s42, 0
      %s45 = sadd.s32 %s44, 1
      %s46 = scalar_select %p43, %s44, %s45
      %p49 = pneg %p43
      %p50 = scmp.eq.s32.totalorder %s20, 1
      %p51 = por %p49, %p50
      %p52 = scmp.ne.s32.totalorder %s44, %s47
      %p53 = scmp.eq.s32.totalorder %s20, 0
      %p54 = por %p52, %p53
      %p55 = scmp.ne.s32.totalorder %s44, %s47
      %p56 = scmp.eq.s32.totalorder %s25, 1
      %p57 = por %p55, %p56
      %p58 = scmp.ne.s32.totalorder %s47, %s48
      %p59 = scmp.eq.s32.totalorder %s25, 0
      %p60 = por %p58, %p59
      %p61 = scmp.ne.s32.totalorder %s47, %s48
      %p62 = scmp.eq.s32.totalorder %s26, 1
      %p63 = por %p61, %p62
      %p65 = scmp.ne.s32.totalorder %s48, %s64
      %p66 = scmp.eq.s32.totalorder %s26, 0
      %p67 = por %p65, %p66
      %s68 = ssub.s32 %s27, %s39
      %s69 = ssub.s32 %s28, %s35
      %s70 = sor.u32 %s68, %s69
      %p71 = scmp.eq.s32.totalorder %s70, 0
      %s73 = sadd.s32 %s72, 1
      %s74 = scalar_select %p71, %s72, %s73
      %p77 = pneg %p71
      %p78 = scmp.eq.s32.totalorder %s20, 1
      %p79 = por %p77, %p78
      %p80 = scmp.ne.s32.totalorder %s72, %s75
      %p81 = scmp.eq.s32.totalorder %s20, 0
      %p82 = por %p80, %p81
      %p83 = scmp.ne.s32.totalorder %s72, %s75
      %p84 = scmp.eq.s32.totalorder %s25, 1
      %p85 = por %p83, %p84
      %p86 = scmp.ne.s32.totalorder %s75, %s76
      %p87 = scmp.eq.s32.totalorder %s25, 0
      %p88 = por %p86, %p87
      %p89 = scmp.ne.s32.totalorder %s75, %s76
      %p90 = scmp.eq.s32.totalorder %s26, 1
      %p91 = por %p89, %p90
      %p93 = scmp.ne.s32.totalorder %s76, %s92
      %p94 = scmp.eq.s32.totalorder %s26, 0
      %p95 = por %p93, %p94
      %s96 = ssub.s32 %s27, %s39
      %s97 = ssub.s32 %s28, %s35
      %s98 = sor.u32 %s96, %s97
      %p99 = scmp.eq.s32.totalorder %s98, 0
      %s101 = sadd.s32 %s100, 1
      %s102 = scalar_select %p99, %s100, %s101
      %p105 = pneg %p99
      %p106 = scmp.eq.s32.totalorder %s20, 1
      %p107 = por %p105, %p106
      %p108 = scmp.ne.s32.totalorder %s100, %s103
      %p109 = scmp.eq.s32.totalorder %s20, 0
      %p110 = por %p108, %p109
      %p111 = scmp.ne.s32.totalorder %s100, %s103
      %p112 = scmp.eq.s32.totalorder %s25, 1
      %p113 = por %p111, %p112
      %p114 = scmp.ne.s32.totalorder %s103, %s104
      %p115 = scmp.eq.s32.totalorder %s25, 0
      %p116 = por %p114, %p115
      %p117 = scmp.ne.s32.totalorder %s103, %s104
      %p118 = scmp.eq.s32.totalorder %s26, 1
      %p119 = por %p117, %p118
      %p121 = scmp.ne.s32.totalorder %s104, %s120
      %p122 = scmp.eq.s32.totalorder %s26, 0
      %p123 = por %p121, %p122
      %p124 = scmp.le.s32.totalorder 1, %s20
      %p125 = scmp.lt.s32.totalorder %s20, 3
      %p126 = pnand %p124, %p125
      %p127 = pneg %p126
      // Predicated region
      $region9: #{tpu_custom_call.1} parent=5 // pred_check
        _
      $region10: #{tpu_custom_call.1} parent=5 // pred_check_branch
        %129 = sbr.rel (%p126) target = $region12
      $region11: #{tpu_custom_call.1} parent=5 // pred_region
        %s130 = ssub.s32 %s20, 1
      $region12: #{tpu_custom_call.1} parent=5 // pred_fallthru
        _
      %p131 = scmp.lt.s32.totalorder %s20, 2
      // Predicated region
      $region13: #{tpu_custom_call.1} parent=5 // pred_check
        %p132 = pneg %p131
      $region14: #{tpu_custom_call.1} parent=5 // pred_check_branch
        %134 = sbr.rel (%p132) target = $region16
      $region15: #{tpu_custom_call.1} parent=5 // pred_region
        // Predicated region
        $region17: #{tpu_custom_call.1} parent=15 // pred_check
          %p135 = pneg %p54
        $region18: #{tpu_custom_call.1} parent=15 // pred_check_branch
          %137 = sbr.rel (%p135) target = $region20
        $region19: #{tpu_custom_call.1} parent=15 // pred_region
          %s138 = sand.u32 %s44, 1
          %s139 = scalar_lea.sflag [#allocation5], %s138
          %s140 = sand.u32 %s44, 1
          %s141 = smul.addr %s140, 8
          %s142 = scalar_lea.vmem [#allocation4], %s141
          %s144 = ssub.s32 128, 128
          %145 = vsyncadd %s139, %s144
          %s146 = smul.addr %s27, 2
          %s147 = sadd.s32 %s28, %s146
          %s148 = smul.addr %s147, 128
          %s149 = scalar_lea.hbm %s1, %s148
          %s151 = sshll.u32 %s142, 4
          %s152 = int_to_ptr.vmem [resolvable:$true] %s151
          %154 = dma.hbm_to_vmem [thread:$0]  %s149, 128, %s152, %s139
        $region20: #{tpu_custom_call.1} parent=15 // pred_fallthru
          _
      $region16: #{tpu_custom_call.1} parent=5 // pred_fallthru
        _
      %p155 = scmp.le.s32.totalorder 1, %s20
      %p156 = scmp.lt.s32.totalorder %s20, 3
      %p157 = pnand %p155, %p156
      %p158 = pneg %p157
      // Predicated region
      $region21: #{tpu_custom_call.1} parent=5 // pred_check
        _
      $region22: #{tpu_custom_call.1} parent=5 // pred_check_branch
        %160 = sbr.rel (%p157) target = $region24
      $region23: #{tpu_custom_call.1} parent=5 // pred_region
        %s161 = ssub.s32 %s20, 1
        %s162 = sand.u32 %s47, 1
        %s163 = scalar_lea.sflag [#allocation5], %s162
        %s164 = sand.u32 %s47, 1
        %s165 = smul.addr %s164, 8
        %s166 = scalar_lea.vmem [#allocation4], %s165
        // Predicated region
        $region25: #{tpu_custom_call.1} parent=23 // pred_check
          %p167 = pneg %p60
        $region26: #{tpu_custom_call.1} parent=23 // pred_check_branch
          %169 = sbr.rel (%p167) target = $region28
        $region27: #{tpu_custom_call.1} parent=23 // pred_region
          %170 = dma.done %s163, 128
        $region28: #{tpu_custom_call.1} parent=23 // pred_fallthru
          _
        %s171 = sand.u32 %s47, 1
        %s172 = scalar_lea.sflag [#allocation5], %s171
        %s173 = sand.u32 %s47, 1
        %s174 = smul.addr %s173, 8
        %s175 = scalar_lea.vmem [#allocation4], %s174
        %p176 = pneg %p60
        %p177 = pneg %p57
        %p178 = pneg %p88
        %p179 = pneg %p85
        %s180 = sand.u32 %s75, 1
        %s181 = scalar_lea.sflag [#allocation6], %s180
        %s182 = sand.u32 %s75, 1
        %s183 = smul.addr %s182, 8
        %s184 = scalar_lea.vmem [#allocation7], %s183
        %p185 = pneg %p116
        %p186 = pneg %p113
        %s187 = sand.u32 %s103, 1
        %s188 = scalar_lea.sflag [#allocation9], %s187
        %s189 = sand.u32 %s103, 1
        %s190 = smul.addr %s189, 8
        %s191 = scalar_lea.vmem [#allocation8], %s190
        %s192 = sld [smem:[#allocation3]]
        %s193 = smul.f32 %s192, %s192
        %v194 = vld [vmem:[%s166] sm:$0xff]
        %vm195 = vcmp.eq.f32.partialorder %v194, %v194
        %v196 = vmul.f32 %v194, %v194
        %v197 = vstv %s193
        %v198 = vadd.f32 %v197, %v196
        %v199 = vrsqrt.pop %v198
        %v200 = vmul.f32 %v198, %v199
        %vm201 = vcmp.eq.f32.partialorder %v198, inf
        %v202 = vsel %vm201, %v198, %v200
        %vm203 = vcmp.eq.f32.partialorder %v198, 0.0
        %v204 = vand.u32 %v198, 2147483648
        %v205 = vsel %vm203, %v204, %v202
        %v206 = vsel %vm195, %v205, 0.0
        %v207 = vadd.f32 %v206, 0.0
        %v208 = vsel %vm195, 1, 0
        %v209 = vcvt.s32.f32 %v208
        %v210 = vadd.f32 %v209, 0.0
        %211 = vst [vmem:[%s184] sm:$0xff] %v207
        %212 = vst [vmem:[%s191] sm:$0xff] %v210
        %s213 = sand.u32 %s75, 1
        %s214 = scalar_lea.sflag [#allocation6], %s213
        %s215 = sand.u32 %s75, 1
        %s216 = smul.addr %s215, 8
        %s217 = scalar_lea.vmem [#allocation7], %s216
        %s218 = sand.u32 %s103, 1
        %s219 = scalar_lea.sflag [#allocation9], %s218
        %s220 = sand.u32 %s103, 1
        %s221 = smul.addr %s220, 8
        %s222 = scalar_lea.vmem [#allocation8], %s221
        // Predicated region
        $region29: #{tpu_custom_call.1} parent=23 // pred_check
          %p223 = pneg %p85
        $region30: #{tpu_custom_call.1} parent=23 // pred_check_branch
          %225 = sbr.rel (%p223) target = $region32
        $region31: #{tpu_custom_call.1} parent=23 // pred_region
          %s227 = ssub.s32 128, 128
          %228 = vsyncadd %s214, %s227
          %s229 = smul.addr %s29, 2
          %s230 = sadd.s32 %s30, %s229
          %s231 = smul.addr %s230, 128
          %s232 = scalar_lea.hbm %s2, %s231
          %s234 = sshll.u32 %s217, 4
          %s235 = int_to_ptr.vmem [resolvable:$true] %s234
          %237 = dma.vmem_to_hbm [thread:$0]  %s235, 128, %s232, %s214
        $region32: #{tpu_custom_call.1} parent=23 // pred_fallthru
          _
        // Predicated region
        $region33: #{tpu_custom_call.1} parent=23 // pred_check
          %p238 = pneg %p113
        $region34: #{tpu_custom_call.1} parent=23 // pred_check_branch
          %240 = sbr.rel (%p238) target = $region36
        $region35: #{tpu_custom_call.1} parent=23 // pred_region
          %s242 = ssub.s32 128, 128
          %243 = vsyncadd %s219, %s242
          %s244 = smul.addr %s29, 2
          %s245 = sadd.s32 %s30, %s244
          %s246 = smul.addr %s245, 128
          %s247 = scalar_lea.hbm %s3, %s246
          %s249 = sshll.u32 %s222, 4
          %s250 = int_to_ptr.vmem [resolvable:$true] %s249
          %252 = dma.vmem_to_hbm [thread:$0]  %s250, 128, %s247, %s219
        $region36: #{tpu_custom_call.1} parent=23 // pred_fallthru
          _
      $region24: #{tpu_custom_call.1} parent=5 // pred_fallthru
        _
      %p253 = scmp.le.s32.totalorder 2, %s20
      // Predicated region
      $region37: #{tpu_custom_call.1} parent=5 // pred_check
        %p254 = pneg %p253
      $region38: #{tpu_custom_call.1} parent=5 // pred_check_branch
        %256 = sbr.rel (%p254) target = $region40
      $region39: #{tpu_custom_call.1} parent=5 // pred_region
        %s257 = ssub.s32 %s20, 2
        // Predicated region
        $region41: #{tpu_custom_call.1} parent=39 // pred_check
          %p258 = pneg %p91
        $region42: #{tpu_custom_call.1} parent=39 // pred_check_branch
          %260 = sbr.rel (%p258) target = $region44
        $region43: #{tpu_custom_call.1} parent=39 // pred_region
          %s261 = sand.u32 %s76, 1
          %s262 = scalar_lea.sflag [#allocation6], %s261
          %s263 = sand.u32 %s76, 1
          %s264 = smul.addr %s263, 8
          %s265 = scalar_lea.vmem [#allocation7], %s264
          %266 = dma.done %s262, 128
        $region44: #{tpu_custom_call.1} parent=39 // pred_fallthru
          _
        // Predicated region
        $region45: #{tpu_custom_call.1} parent=39 // pred_check
          %p267 = pneg %p119
        $region46: #{tpu_custom_call.1} parent=39 // pred_check_branch
          %269 = sbr.rel (%p267) target = $region48
        $region47: #{tpu_custom_call.1} parent=39 // pred_region
          %s270 = sand.u32 %s104, 1
          %s271 = scalar_lea.sflag [#allocation9], %s270
          %s272 = sand.u32 %s104, 1
          %s273 = smul.addr %s272, 8
          %s274 = scalar_lea.vmem [#allocation8], %s273
          %275 = dma.done %s271, 128
        $region48: #{tpu_custom_call.1} parent=39 // pred_fallthru
          _
      $region40: #{tpu_custom_call.1} parent=5 // pred_fallthru
        _
    $region6: #{tpu_custom_call.1} parent=1 // loop_footer
      %s24 = sadd.s32 1, %s20
    $region7: #{tpu_custom_call.1} parent=1 // loop_footer_branch
      %19 = sbr.rel target = $region3
    $region8: #{tpu_custom_call.1} parent=1 // loop_exit
      _
    %276 = vsyncpa [#allocation5], 1
    %s277 = scalar_lea.sflag [#allocation5], 1
    %278 = vsyncpa %s277, 1
    %279 = vsyncpa [#allocation6], 1
    %s280 = scalar_lea.sflag [#allocation6], 1
    %281 = vsyncpa %s280, 1
    %282 = vsyncpa [#allocation9], 1
    %s283 = scalar_lea.sflag [#allocation9], 1
    %284 = vsyncpa %s283, 1

</llo_original>
